<compile_context>
chip_gen: v7x
topology: tpu7x:2x2x1
jax: 0.10.0
libtpu: 0.0.40
codegen_flags: <defaults>
</compile_context>

<pallas_src>
import jax
import jax.numpy as jnp
from jax.experimental import pallas as pl
from jax.experimental.pallas import tpu as pltpu

EPS = 1e-5


def _round_up(x, m):
    return (x + m - 1) // m * m


def _make_prenorm_linear_kernel(d_real, d_pad):
    """Kernel factory; d_real / d_pad are static (baked into the trace)."""

    def kernel(x_ref, gamma_ref, beta_ref, w_ref, b_ref, o_ref, y_ref):
        # x_ref:      (tm, Dp)  input rows (original dtype)
        # gamma/beta: (1, Dp)   f32 LayerNorm affine params (zero-padded lanes)
        # w_ref:      (Dp, tn)  bf16 slice of W^T for this output-column tile
        # b_ref:      (1, tn)   f32 bias slice
        # o_ref:      (tm, tn)  output tile
        # y_ref:      (tm, Dp)  bf16 scratch: LayerNorm(x) * gamma + beta
        j = pl.program_id(1)

        # LayerNorm once per row tile; reused across all output-column tiles.
        @pl.when(j == 0)
        def _():
            x = x_ref[...].astype(jnp.float32)
            inv_d = jnp.float32(1.0 / d_real)
            mean = jnp.sum(x, axis=-1, keepdims=True) * inv_d  # zero lanes don't bias
            centered = x - mean
            if d_pad != d_real:
                # (1, Dp) lane mask; broadcasts against (tm, Dp) in the where.
                lane = jax.lax.broadcasted_iota(jnp.int32, (1, d_pad), 1)
                centered = jnp.where(lane < d_real, centered, 0.0)
            var = jnp.sum(centered * centered, axis=-1, keepdims=True) * inv_d
            xn = centered * jax.lax.rsqrt(var + EPS)           # EUP rsqrt
            y = xn * gamma_ref[...] + beta_ref[...]             # f32 elementwise
            y_ref[...] = y.astype(y_ref.dtype)

        # fn = Linear(dim, dim): y @ W^T[:, cols] + b[cols]; bf16 MXU, f32 acc.
        out = jnp.dot(y_ref[...], w_ref[...], preferred_element_type=jnp.float32)
        o_ref[...] = (out + b_ref[...]).astype(o_ref.dtype)

    return kernel


def prepare_prenorm_linear_params(gamma, beta, weight, bias, *,
                                  compute_dtype=jnp.bfloat16):
    """One-time parameter prep (transpose / cast / lane-pad).  Call once at
    init and reuse across forward calls — transposing a (D, D) matrix in XLA
    on every call is a pure HBM round-trip the kernel can't hide."""
    D = int(gamma.shape[0])
    Dp = _round_up(D, 128)
    pad = Dp - D
    g2 = jnp.pad(gamma.astype(jnp.float32), (0, pad)).reshape(1, Dp)
    bt2 = jnp.pad(beta.astype(jnp.float32), (0, pad)).reshape(1, Dp)
    # torch nn.Linear stores (out_features, in_features); kernel wants W^T.
    wT = jnp.pad(weight.T.astype(compute_dtype), ((0, pad), (0, pad)))
    b2 = jnp.pad(bias.astype(jnp.float32), (0, pad)).reshape(1, Dp)
    return {"gamma": g2, "beta": bt2, "w_t": wT, "bias": b2,
            "dim": D, "dim_padded": Dp, "compute_dtype": compute_dtype}


def _pick_tn(d_pad):
    for t in (512, 256, 128):
        if d_pad % t == 0:
            return min(t, d_pad)
    return 128  # unreachable: d_pad is always a multiple of 128


def prenorm_linear(x, params, *, tile_rows=None, out_dtype=None):
    """x: (B, N, D); params from prepare_prenorm_linear_params.
    Returns (B, N, D) = Linear(LayerNorm(x))."""
    B, N, D = x.shape
    assert D == params["dim"], "params were prepared for a different dim"
    Dp = params["dim_padded"]
    compute_dtype = params["compute_dtype"]
    rows = B * N
    out_dtype = x.dtype if out_dtype is None else out_dtype

    # Row tile: large tiles amortize the ~0.35 us/step overhead and push the
    # HBM-bound small-D regime toward roofline; clamped for tiny inputs.
    if tile_rows is None:
        tile_rows = 512 if Dp <= 1024 else 256
    tm = _round_up(min(tile_rows, _round_up(rows, 8)), 8)
    tn = _pick_tn(Dp)

    x2 = x.reshape(rows, D)
    if Dp != D:
        # Lane-pad the feature dim only.  Rows are handled by a ragged last
        # grid block (masked writes) — no row pad / slice HBM round trip.
        x2 = jnp.pad(x2, ((0, 0), (0, Dp - D)))

    grid = (pl.cdiv(rows, tm), Dp // tn)

    # VMEM budget: double-buffered x / out / W-slice / bias tiles, gamma+beta
    # (8-sublane padded), plus the single LayerNorm scratch buffer.
    xb = jnp.dtype(x.dtype).itemsize
    ob = jnp.dtype(out_dtype).itemsize
    cb = jnp.dtype(compute_dtype).itemsize
    vmem_est = (2 * tm * Dp * xb          # x tile (double-buffered)
                + 2 * tm * tn * ob        # out tile
                + 2 * Dp * tn * cb        # streamed W^T slice
                + 2 * 2 * 8 * Dp * 4      # gamma + beta (sublane-padded rows)
                + 2 * 8 * tn * 4          # bias slice
                + tm * Dp * cb)           # LayerNorm scratch (single)
    try:
        vmem_physical = int(pltpu.get_tpu_info().vmem_capacity_bytes)
    except Exception:  # no hardware info available: assume smallest (v7x, 64 MiB)
        vmem_physical = 64 * 1024 * 1024
    vmem_cap = min(vmem_physical - 8 * 1024 * 1024, 100 * 1024 * 1024)
    vmem_limit = None
    needed = int(vmem_est * 1.3)
    if needed > 12 * 1024 * 1024:  # below v5e's 16 MiB default scoped limit
        vmem_limit = int(min(max(needed, 16 * 1024 * 1024), vmem_cap))

    kernel = _make_prenorm_linear_kernel(D, Dp)

    out = pl.pallas_call(
        kernel,
        out_shape=jax.ShapeDtypeStruct((rows, Dp), out_dtype),
        grid_spec=pltpu.PrefetchScalarGridSpec(
            num_scalar_prefetch=0,
            grid=grid,
            in_specs=[
                pl.BlockSpec((tm, Dp), lambda i, j: (i, 0)),   # x rows
                pl.BlockSpec((1, Dp), lambda i, j: (0, 0)),    # gamma (f32)
                pl.BlockSpec((1, Dp), lambda i, j: (0, 0)),    # beta  (f32)
                pl.BlockSpec((Dp, tn), lambda i, j: (0, j)),   # W^T slice (bf16)
                pl.BlockSpec((1, tn), lambda i, j: (0, j)),    # bias slice (f32)
            ],
            out_specs=pl.BlockSpec((tm, tn), lambda i, j: (i, j)),
            scratch_shapes=[pltpu.VMEM((tm, Dp), compute_dtype)],
        ),
        compiler_params=pltpu.CompilerParams(
            # Row tiles are independent (megacore-shardable).  Column tiles
            # reuse the LayerNorm scratch written at j == 0, so that axis must
            # stay in-order on one core -> "arbitrary".
            dimension_semantics=("parallel", "arbitrary"),
            vmem_limit_bytes=vmem_limit),
    )(x2, params["gamma"], params["beta"], params["w_t"], params["bias"])

    if Dp != D:
        out = out[:, :D]
    return out.reshape(B, N, D)


def prenorm_linear_ref(x, gamma, beta, weight, bias):
    """Pure-JAX f32 reference matching nn.LayerNorm + nn.Linear."""
    xf = x.astype(jnp.float32)
    mean = jnp.mean(xf, axis=-1, keepdims=True)
    var = jnp.mean((xf - mean) ** 2, axis=-1, keepdims=True)
    xn = (xf - mean) / jnp.sqrt(var + EPS)
    y = xn * gamma + beta
    out = y @ weight.T + bias
    return out.astype(x.dtype)


if __name__ == "__main__":
    key = jax.random.PRNGKey(0)
    kx, kg, kb, kw, kbi = jax.random.split(key, 5)

    B, N, D = 2, 8, 32   # batch=2, seq=8, hidden=32
    x = jax.random.normal(kx, (B, N, D), dtype=jnp.float32)

    # LayerNorm params (default gamma=1, beta=0; perturbed so they're exercised)
    gamma = jnp.ones((D,), jnp.float32) + 0.1 * jax.random.normal(kg, (D,))
    beta = 0.1 * jax.random.normal(kb, (D,))
    # fn = Linear(D, D): torch-layout weight (out_features, in_features).
    weight = jax.random.normal(kw, (D, D), dtype=jnp.float32) * (1.0 / jnp.sqrt(D))
    bias = 0.1 * jax.random.normal(kbi, (D,))

    # One-time parameter preparation (hoisted out of the per-call path).
    params = prepare_prenorm_linear_params(gamma, beta, weight, bias)

    out = prenorm_linear(x, params)
    out = jax.block_until_ready(out)

    ref = prenorm_linear_ref(x, gamma, beta, weight, bias)
    assert out.shape == (B, N, D)
    # bf16 matmul (f32 accumulation) vs all-f32 reference -> relaxed tolerance.
    assert jnp.allclose(out, ref, atol=5e-2, rtol=5e-2), "mismatch vs reference"

    print("KERNEL_OK")
</pallas_src>

<mosaic_0001>
module attributes {stable_mosaic.version = 11 : i64} {
  func.func @kernel(%arg0: i32, %arg1: i32, %arg2: memref<16x128xf32, #tpu.memory_space<vmem>>, %arg3: memref<1x128xf32, #tpu.memory_space<vmem>>, %arg4: memref<1x128xf32, #tpu.memory_space<vmem>>, %arg5: memref<128x128xbf16, #tpu.memory_space<vmem>>, %arg6: memref<1x128xf32, #tpu.memory_space<vmem>>, %arg7: memref<16x128xf32, #tpu.memory_space<vmem>>, %arg8: memref<16x128xbf16, #tpu.memory_space<vmem>>) attributes {dimension_semantics = [#tpu.dimension_semantics<parallel>, #tpu.dimension_semantics<arbitrary>], iteration_bounds = array<i64: 1, 1>, scalar_prefetch = 0 : i64, scratch_operands = 1 : i64, tpu.core_type = #tpu.core_type<tc>, window_params = [{transform_indices = @transform_0, window_bounds = array<i64: 16, 128>}, {pipeline_mode = #tpu.pipeline_mode<synchronous>, transform_indices = @transform_1, window_bounds = array<i64: 1, 128>}, {pipeline_mode = #tpu.pipeline_mode<synchronous>, transform_indices = @transform_2, window_bounds = array<i64: 1, 128>}, {transform_indices = @transform_3, window_bounds = array<i64: 128, 128>}, {transform_indices = @transform_4, window_bounds = array<i64: 1, 128>}, {transform_indices = @transform_5, window_bounds = array<i64: 16, 128>}]} {
    %c0_i32 = arith.constant 0 : i32
    %0 = arith.cmpi eq, %arg1, %c0_i32 : i32
    %1 = arith.extui %0 : i1 to i32
    %c0_i32_0 = arith.constant 0 : i32
    %2 = arith.cmpi ne, %1, %c0_i32_0 : i32
    scf.if %2 {
      %c0_8 = arith.constant 0 : index
      %c0_9 = arith.constant 0 : index
      %10 = vector.load %arg2[%c0_8, %c0_9] : memref<16x128xf32, #tpu.memory_space<vmem>>, vector<16x128xf32>
      %cst_10 = arith.constant dense<0.000000e+00> : vector<16xf32>
      %11 = vector.multi_reduction <add>, %10, %cst_10 [1] : vector<16x128xf32> to vector<16xf32>
      %12 = vector.shape_cast %11 : vector<16xf32> to vector<16x1xf32>
      %cst_11 = arith.constant 3.125000e-02 : f32
      %13 = vector.broadcast %cst_11 : f32 to vector<16x1xf32>
      %14 = arith.mulf %12, %13 : vector<16x1xf32>
      %15 = vector.broadcast %14 : vector<16x1xf32> to vector<16x128xf32>
      %16 = arith.subf %10, %15 : vector<16x128xf32>
      %17 = tpu.iota {dimensions = array<i32: 1>} : vector<1x128xi32>
      %c32_i32 = arith.constant 32 : i32
      %18 = vector.broadcast %c32_i32 : i32 to vector<1x128xi32>
      %19 = arith.cmpi slt, %17, %18 : vector<1x128xi32>
      %cst_12 = arith.constant 0.000000e+00 : f32
      %20 = vector.shape_cast %19 : vector<1x128xi1> to vector<1x128xi1>
      %21 = vector.broadcast %20 : vector<1x128xi1> to vector<16x128xi1>
      %22 = vector.broadcast %cst_12 : f32 to vector<16x128xf32>
      %23 = arith.select %21, %16, %22 : vector<16x128xi1>, vector<16x128xf32>
      %24 = arith.mulf %23, %23 : vector<16x128xf32>
      %cst_13 = arith.constant dense<0.000000e+00> : vector<16xf32>
      %25 = vector.multi_reduction <add>, %24, %cst_13 [1] : vector<16x128xf32> to vector<16xf32>
      %26 = vector.shape_cast %25 : vector<16xf32> to vector<16x1xf32>
      %cst_14 = arith.constant 3.125000e-02 : f32
      %27 = vector.broadcast %cst_14 : f32 to vector<16x1xf32>
      %28 = arith.mulf %26, %27 : vector<16x1xf32>
      %cst_15 = arith.constant 9.99999974E-6 : f32
      %29 = vector.broadcast %cst_15 : f32 to vector<16x1xf32>
      %30 = arith.addf %28, %29 : vector<16x1xf32>
      %31 = math.rsqrt %30 : vector<16x1xf32>
      %32 = vector.broadcast %31 : vector<16x1xf32> to vector<16x128xf32>
      %33 = arith.mulf %23, %32 : vector<16x128xf32>
      %c0_16 = arith.constant 0 : index
      %c0_17 = arith.constant 0 : index
      %34 = vector.load %arg3[%c0_16, %c0_17] : memref<1x128xf32, #tpu.memory_space<vmem>>, vector<1x128xf32>
      %35 = vector.broadcast %34 : vector<1x128xf32> to vector<16x128xf32>
      %36 = arith.mulf %33, %35 : vector<16x128xf32>
      %c0_18 = arith.constant 0 : index
      %c0_19 = arith.constant 0 : index
      %37 = vector.load %arg4[%c0_18, %c0_19] : memref<1x128xf32, #tpu.memory_space<vmem>>, vector<1x128xf32>
      %38 = vector.broadcast %37 : vector<1x128xf32> to vector<16x128xf32>
      %39 = arith.addf %36, %38 : vector<16x128xf32>
      %40 = arith.truncf %39 : vector<16x128xf32> to vector<16x128xbf16>
      %c0_20 = arith.constant 0 : index
      %c0_21 = arith.constant 0 : index
      %41 = vector.load %arg8[%c0_20, %c0_21] : memref<16x128xbf16, #tpu.memory_space<vmem>>, vector<16x128xbf16>
      tpu.vector_store %arg8[%c0_20, %c0_21], %40 {strides = array<i32>} : memref<16x128xbf16, #tpu.memory_space<vmem>>, vector<16x128xbf16>,
    } else {
    }
    %c0 = arith.constant 0 : index
    %c0_1 = arith.constant 0 : index
    %3 = vector.load %arg8[%c0, %c0_1] : memref<16x128xbf16, #tpu.memory_space<vmem>>, vector<16x128xbf16>
    %c0_2 = arith.constant 0 : index
    %c0_3 = arith.constant 0 : index
    %4 = vector.load %arg5[%c0_2, %c0_3] : memref<128x128xbf16, #tpu.memory_space<vmem>>, vector<128x128xbf16>
    %cst = arith.constant dense<0.000000e+00> : vector<16x128xf32>
    %5 = tpu.matmul %3, %4, %cst {dimension_numbers = #tpu.dot_dimension_numbers<[1], [0], [0], [1], [0, 0, 1, 1], [], []>} : vector<16x128xbf16>, vector<128x128xbf16>, vector<16x128xf32> -> vector<16x128xf32>
    %c0_4 = arith.constant 0 : index
    %c0_5 = arith.constant 0 : index
    %6 = vector.load %arg6[%c0_4, %c0_5] : memref<1x128xf32, #tpu.memory_space<vmem>>, vector<1x128xf32>
    %7 = vector.broadcast %6 : vector<1x128xf32> to vector<16x128xf32>
    %8 = arith.addf %5, %7 : vector<16x128xf32>
    %c0_6 = arith.constant 0 : index
    %c0_7 = arith.constant 0 : index
    %9 = vector.load %arg7[%c0_6, %c0_7] : memref<16x128xf32, #tpu.memory_space<vmem>>, vector<16x128xf32>
    tpu.vector_store %arg7[%c0_6, %c0_7], %8 {strides = array<i32>} : memref<16x128xf32, #tpu.memory_space<vmem>>, vector<16x128xf32>,
    return
  }
  func.func @transform_0(%arg0: i32, %arg1: i32) -> (i32, i32) {
    %c0_i32 = arith.constant 0 : i32
    %c0_i32_0 = arith.constant 0 : i32
    return %arg0, %c0_i32 : i32, i32
  }
  func.func @transform_1(%arg0: i32, %arg1: i32) -> (i32, i32) {
    %c0_i32 = arith.constant 0 : i32
    %c0_i32_0 = arith.constant 0 : i32
    %c0_i32_1 = arith.constant 0 : i32
    return %c0_i32, %c0_i32_0 : i32, i32
  }
  func.func @transform_2(%arg0: i32, %arg1: i32) -> (i32, i32) {
    %c0_i32 = arith.constant 0 : i32
    %c0_i32_0 = arith.constant 0 : i32
    %c0_i32_1 = arith.constant 0 : i32
    return %c0_i32, %c0_i32_0 : i32, i32
  }
  func.func @transform_3(%arg0: i32, %arg1: i32) -> (i32, i32) {
    %c0_i32 = arith.constant 0 : i32
    %c0_i32_0 = arith.constant 0 : i32
    return %c0_i32, %arg1 : i32, i32
  }
  func.func @transform_4(%arg0: i32, %arg1: i32) -> (i32, i32) {
    %c0_i32 = arith.constant 0 : i32
    %c0_i32_0 = arith.constant 0 : i32
    return %c0_i32, %arg1 : i32, i32
  }
  func.func @transform_5(%arg0: i32, %arg1: i32) -> (i32, i32) {
    %c0_i32 = arith.constant 0 : i32
    return %arg0, %arg1 : i32, i32
  }
}

</mosaic_0001>

<llo_original>
// kernel: tpu_custom_call.1
$region0: #{tpu_custom_call.1}
  #allocation0 [shape = 'u32[]', space=smem, size = 0x4, offset = 0x4, fixed_abs, tag = 'smem constant byte address 0x4 - core index']
  #allocation1 [shape = 'u32[144,128]{1,0:T(1,128)}', space=vmem, size = 0x12000, scoped, tag = 'internal scratch']
  #allocation2 [shape = 'bf16[16,128]{1,0:T(16,128)(2,1)}', space=vmem, size = 0x1000, scoped, tag = 'scratch operand']
  %s0 = inlined_call_operand.hbm [shape: f32[16,128], index: 0, kind: input, shape index: {}]
  %s1 = inlined_call_operand.vmem [shape: f32[1,128], index: 1, kind: input, shape index: {}]
  %s2 = inlined_call_operand.vmem [shape: f32[1,128], index: 2, kind: input, shape index: {}]
  %s3 = inlined_call_operand.hbm [shape: bf16[128,128], index: 3, kind: input, shape index: {}]
  %s4 = inlined_call_operand.vmem [shape: f32[1,128], index: 4, kind: input, shape index: {}]
  %s5 = inlined_call_operand.hbm [shape: f32[16,128], index: 5, kind: output, shape index: {}]
  %s6 = sld [smem:[#allocation0]]
  $region42: #{tpu_custom_call.1} parent=0
    _
  %s8 = ssub.s32 1, %s6
  %s9 = scalar_select 0, %s8, %s6
  $region1: #{tpu_custom_call.1} parent=0
    #allocation3 [shape = 'u8[8192]{0}', space=vmem, size = 0x2000, scoped, tag = 'input window, operand 0, single buffered']
    #allocation4 [shape = 's32[1]{0}', space=sflag, size = 0x4, scoped, tag = 'scoped memory for tpu_custom_call.1']
    #allocation5 [shape = 's32[1]{0}', space=sflag, size = 0x4, scoped, tag = 'scoped memory for tpu_custom_call.1']
    #allocation6 [shape = 'u8[32768]{0}', space=vmem, size = 0x8000, scoped, tag = 'input window, operand 3, single buffered']
    #allocation7 [shape = 's32[1]{0}', space=sflag, size = 0x4, scoped, tag = 'scoped memory for tpu_custom_call.1']
    #allocation8 [shape = 'u8[8192]{0}', space=vmem, size = 0x2000, scoped, tag = 'output window, operand 0, single buffered']
    %10 = vsyncpa [#allocation4], 0
    %11 = vsyncpa [#allocation7], 0
    %12 = vsyncpa [#allocation5], 0
    // Predicated region
    $region2: #{tpu_custom_call.1} parent=1 // pred_check
      _
    $region3: #{tpu_custom_call.1} parent=1 // pred_check_branch
      %14 = sbr.rel (0) target = $region5
    $region4: #{tpu_custom_call.1} parent=1 // pred_region
      %s16 = ssub.s32 256, 256
      %17 = vsyncadd [#allocation4], %s16
      %s18 = sshll.u32 [#allocation3], 4
      %s19 = int_to_ptr.vmem [resolvable:$true] %s18
      %24 = dma.hbm_to_vmem [thread:$0]  %s0, 256, %s19, [#allocation4], 128, 128, 8
    $region5: #{tpu_custom_call.1} parent=1 // pred_fallthru
      _
    // Predicated region
    $region6: #{tpu_custom_call.1} parent=1 // pred_check
      _
    $region7: #{tpu_custom_call.1} parent=1 // pred_check_branch
      %26 = sbr.rel (0) target = $region9
    $region8: #{tpu_custom_call.1} parent=1 // pred_region
      _
    $region9: #{tpu_custom_call.1} parent=1 // pred_fallthru
      _
    // Predicated region
    $region10: #{tpu_custom_call.1} parent=1 // pred_check
      _
    $region11: #{tpu_custom_call.1} parent=1 // pred_check_branch
      %28 = sbr.rel (0) target = $region13
    $region12: #{tpu_custom_call.1} parent=1 // pred_region
      _
    $region13: #{tpu_custom_call.1} parent=1 // pred_fallthru
      _
    // Predicated region
    $region14: #{tpu_custom_call.1} parent=1 // pred_check
      _
    $region15: #{tpu_custom_call.1} parent=1 // pred_check_branch
      %30 = sbr.rel (0) target = $region17
    $region16: #{tpu_custom_call.1} parent=1 // pred_region
      %s32 = ssub.s32 1024, 1024
      %33 = vsyncadd [#allocation7], %s32
      %s34 = sshll.u32 [#allocation6], 4
      %s35 = int_to_ptr.vmem [resolvable:$true] %s34
      %40 = dma.hbm_to_vmem [thread:$0]  %s3, 1024, %s35, [#allocation7], 64, 64, 4
    $region17: #{tpu_custom_call.1} parent=1 // pred_fallthru
      _
    // Predicated region
    $region18: #{tpu_custom_call.1} parent=1 // pred_check
      _
    $region19: #{tpu_custom_call.1} parent=1 // pred_check_branch
      %42 = sbr.rel (0) target = $region21
    $region20: #{tpu_custom_call.1} parent=1 // pred_region
      _
    $region21: #{tpu_custom_call.1} parent=1 // pred_fallthru
      _
    // Predicated region
    $region22: #{tpu_custom_call.1} parent=1 // pred_check
      _
    $region23: #{tpu_custom_call.1} parent=1 // pred_check_branch
      %44 = sbr.rel (0) target = $region25
    $region24: #{tpu_custom_call.1} parent=1 // pred_region
      %45 = dma.done [#allocation4], 256
    $region25: #{tpu_custom_call.1} parent=1 // pred_fallthru
      _
    // Predicated region
    $region26: #{tpu_custom_call.1} parent=1 // pred_check
      _
    $region27: #{tpu_custom_call.1} parent=1 // pred_check_branch
      %47 = sbr.rel (0) target = $region29
    $region28: #{tpu_custom_call.1} parent=1 // pred_region
      %48 = dma.done [#allocation7], 1024
    $region29: #{tpu_custom_call.1} parent=1 // pred_fallthru
      _
    %p50 = scmp.eq.s32.totalorder 0, 0
    // Predicated region
    $region30: #{tpu_custom_call.1} parent=1 // pred_check
      %p51 = pneg %p50
    $region31: #{tpu_custom_call.1} parent=1 // pred_check_branch
      %53 = sbr.rel (%p51) target = $region33
    $region32: #{tpu_custom_call.1} parent=1 // pred_region
      %v54 = vld [vmem:[#allocation3] sm:$0xff]
      %v55 = vld [vmem:[#allocation3 + $0x8] sm:$0xff]
      %56 = vadd.xlane.f32.xlu0 %v54
      %v57 = vpop.xlane.xlu0 %56
      %58 = vadd.xlane.f32.xlu0 %v55
      %v59 = vpop.xlane.xlu0 %58
      %v60 = vmul.f32 %v57, 0.03125
      %v61 = vmul.f32 %v59, 0.03125
      %v62 = vsub.f32 %v54, %v60
      %v63 = vsub.f32 %v55, %v61
      %v64 = vlaneseq
      %v65 = vand.u32 %v64, 127
      %vm66 = vcmp.lt.s32.totalorder %v65, 32
      %v67 = vsel %vm66, 1, 0
      %vm68 = vcmp.eq.s32.totalorder %v67, 1
      %v69 = vsel %vm68, %v62, 0.0
      %v70 = vsel %vm68, %v63, 0.0
      %v71 = vmul.f32 %v69, %v69
      %v72 = vmul.f32 %v70, %v70
      %73 = vadd.xlane.f32.xlu0 %v71
      %v74 = vpop.xlane.xlu0 %73
      %75 = vadd.xlane.f32.xlu0 %v72
      %v76 = vpop.xlane.xlu0 %75
      %v77 = vmul.f32 %v74, 0.03125
      %v78 = vmul.f32 %v76, 0.03125
      %v79 = vadd.f32 %v77, 1e-05
      %v80 = vadd.f32 %v78, 1e-05
      %v81 = vrsqrt.pop %v79
      %v82 = vrsqrt.pop %v80
      %v83 = vmul.f32 %v69, %v81
      %v84 = vmul.f32 %v70, %v82
      %v85 = vld [vmem:[%s1] sm:$0x1]
      %v87 = vlaneseq
      %v88 = vshrl.u32 %v87, 7
      %v89 = vsub.s32 0, %v88
      %v90 = vrot.slane %v85, %v89
      %v92 = vmul.f32 %v83, %v90
      %v93 = vmul.f32 %v84, %v90
      %v94 = vld [vmem:[%s2] sm:$0x1]
      %v96 = vlaneseq
      %v97 = vshrl.u32 %v96, 7
      %v98 = vsub.s32 0, %v97
      %v99 = vrot.slane %v94, %v98
      %v101 = vadd.f32 %v92, %v99
      %v102 = vadd.f32 %v93, %v99
      %v103 = vpack.c.bf16 %v102, %v101
      %104 = vst [vmem:[#allocation2] sm:$0xff] %v103
    $region33: #{tpu_custom_call.1} parent=1 // pred_fallthru
      _
    %v105 = vld [vmem:[#allocation2] sm:$0xff]
    %v106 = vld [vmem:[#allocation6] sm:$0xf]
    %v107 = vld [vmem:[#allocation6 + $0x4] sm:$0xf]
    %v108 = vld [vmem:[#allocation6 + $0x8] sm:$0xf]
    %v109 = vld [vmem:[#allocation6 + $0xc] sm:$0xf]
    %v110 = vld [vmem:[#allocation6 + $0x10] sm:$0xf]
    %v111 = vld [vmem:[#allocation6 + $0x14] sm:$0xf]
    %v112 = vld [vmem:[#allocation6 + $0x18] sm:$0xf]
    %v113 = vld [vmem:[#allocation6 + $0x1c] sm:$0xf]
    %v114 = vld [vmem:[#allocation6 + $0x20] sm:$0xf]
    %v115 = vld [vmem:[#allocation6 + $0x24] sm:$0xf]
    %v116 = vld [vmem:[#allocation6 + $0x28] sm:$0xf]
    %v117 = vld [vmem:[#allocation6 + $0x2c] sm:$0xf]
    %v118 = vld [vmem:[#allocation6 + $0x30] sm:$0xf]
    %v119 = vld [vmem:[#allocation6 + $0x34] sm:$0xf]
    %v120 = vld [vmem:[#allocation6 + $0x38] sm:$0xf]
    %v121 = vld [vmem:[#allocation6 + $0x3c] sm:$0xf]
    %v122 = vld [vmem:[%s4] sm:$0x1]
    %v124 = vlaneseq
    %v125 = vshrl.u32 %v124, 7
    %v126 = vsub.s32 0, %v125
    %v127 = vrot.slane %v122, %v126
    %v145 = vunpack.c.l.b16 %v106
    %v146 = vunpack.c.l.b16 %v107
    %v147 = vunpack.c.l.b16 %v108
    %v148 = vunpack.c.l.b16 %v109
    %v149 = vunpack.c.l.b16 %v110
    %v150 = vunpack.c.l.b16 %v111
    %v151 = vunpack.c.l.b16 %v112
    %v152 = vunpack.c.l.b16 %v113
    %v153 = vunpack.c.l.b16 %v114
    %v154 = vunpack.c.l.b16 %v115
    %v155 = vunpack.c.l.b16 %v116
    %v156 = vunpack.c.l.b16 %v117
    %v157 = vunpack.c.l.b16 %v118
    %v158 = vunpack.c.l.b16 %v119
    %v159 = vunpack.c.l.b16 %v120
    %v160 = vunpack.c.l.b16 %v121
    %v161 = vpack.c.b16 %v146, %v145
    %v162 = vpack.c.b16 %v148, %v147
    %v163 = vpack.c.b16 %v150, %v149
    %v164 = vpack.c.b16 %v152, %v151
    %v165 = vpack.c.b16 %v154, %v153
    %v166 = vpack.c.b16 %v156, %v155
    %v167 = vpack.c.b16 %v158, %v157
    %v168 = vpack.c.b16 %v160, %v159
    %177 = vmatprep.subr.bf16.mxu0 0
    %178 = vmatpush1.bf16.msra.mxu0 %v161
    %179 = vmatprep.subr.bf16.mxu0 0
    %180 = vmatpush1.bf16.msra.mxu0 %v162
    %181 = vmatprep.subr.bf16.mxu0 0
    %182 = vmatpush1.bf16.msra.mxu0 %v163
    %183 = vmatprep.subr.bf16.mxu0 0
    %184 = vmatpush1.bf16.msra.mxu0 %v164
    %185 = vmatprep.subr.bf16.mxu0 0
    %186 = vmatpush1.bf16.msra.mxu0 %v165
    %187 = vmatprep.subr.bf16.mxu0 0
    %188 = vmatpush1.bf16.msra.mxu0 %v166
    %189 = vmatprep.subr.bf16.mxu0 0
    %190 = vmatpush1.bf16.msra.mxu0 %v167
    %191 = vmatprep.subr.bf16.mxu0 0
    %192 = vmatpush1.bf16.msra.mxu0 %v168
    %193 = vmatprep.subr.bf16.mxu0 0
    %194 = vmatpush1.bf16.msra.mxu0 0
    %195 = vmatprep.subr.bf16.mxu0 0
    %196 = vmatpush1.bf16.msra.mxu0 0
    %197 = vmatprep.subr.bf16.mxu0 0
    %198 = vmatpush1.bf16.msra.mxu0 0
    %199 = vmatprep.subr.bf16.mxu0 0
    %200 = vmatpush1.bf16.msra.mxu0 0
    %201 = vmatprep.subr.bf16.mxu0 0
    %202 = vmatpush1.bf16.msra.mxu0 0
    %203 = vmatprep.subr.bf16.mxu0 0
    %204 = vmatpush1.bf16.msra.mxu0 0
    %205 = vmatprep.subr.bf16.mxu0 0
    %206 = vmatpush1.bf16.msra.mxu0 0
    %207 = vmatprep.subr.bf16.mxu0 0
    %208 = vmatpush1.bf16.msra.mxu0 0
    %209 = vmatprep.mubr.bf16.mxu0 0
    %210 = vmatmul.mubr.bf16.gmra.mrb[0].mxu0 %v105
    %v211 = vpop.f32.mrb[0].mxu0
    %v212 = vadd.f32 %v127, %v211
    %v213 = vpop.f32.mrb[0].mxu0
    %v214 = vpop.f32.mrb[0].mxu0
    %v215 = vadd.f32 %v127, %v214
    %v216 = vpop.f32.mrb[0].mxu0
    %217 = vdwg.mxu0
    %218 = vst [vmem:[#allocation8] sm:$0xff] %v212
    %219 = vst [vmem:[#allocation8 + $0x8] sm:$0xff] %v215
    // Predicated region
    $region34: #{tpu_custom_call.1} parent=1 // pred_check
      _
    $region35: #{tpu_custom_call.1} parent=1 // pred_check_branch
      %221 = sbr.rel (0) target = $region37
    $region36: #{tpu_custom_call.1} parent=1 // pred_region
      %s223 = ssub.s32 256, 256
      %224 = vsyncadd [#allocation5], %s223
      %s225 = sshll.u32 [#allocation8], 4
      %s226 = int_to_ptr.vmem [resolvable:$true] %s225
      %231 = dma.vmem_to_hbm [thread:$0]  %s226, 256, %s5, [#allocation5], 128, 128, 8
    $region37: #{tpu_custom_call.1} parent=1 // pred_fallthru
      _
    // Predicated region
    $region38: #{tpu_custom_call.1} parent=1 // pred_check
      _
    $region39: #{tpu_custom_call.1} parent=1 // pred_check_branch
      %233 = sbr.rel (0) target = $region41
    $region40: #{tpu_custom_call.1} parent=1 // pred_region
      %234 = dma.done [#allocation5], 256
    $region41: #{tpu_custom_call.1} parent=1 // pred_fallthru
      _
    %235 = vsyncpa [#allocation4], 1
    %236 = vsyncpa [#allocation7], 1
    %237 = vsyncpa [#allocation5], 1

</llo_original>
